<compile_context>
chip_gen: v5e
topology: v5e:2x2
jax: 0.10.0
libtpu: 0.0.40
codegen_flags: <defaults>
</compile_context>

<pallas_src>
import functools

import jax
import jax.numpy as jnp
from jax import lax
from jax.experimental import pallas as pl
from jax.experimental.pallas import tpu as pltpu


def _conv1d_kernel(x_ref, w_ref, b_ref, o_ref, pad_ref, lhs_ref, *,
                   K, C_in, stride, TL, pad, L_src):
    """One (batch b, L-tile j) grid step.

    x_ref  : (1, L_src, C_in)   input dtype  -- full raw sequence of batch b (resident)
    w_ref  : (K*C_in, C_out)    compute dtype -- taps flattened into the contraction dim
    b_ref  : (1, C_out)         float32
    o_ref  : (1, TL, C_out)     output dtype
    pad_ref: (L_pad, C_in)      float32 VMEM scratch (zero-padded sequence, built in-kernel)
    lhs_ref: (TL, K*C_in)       compute dtype VMEM scratch (im2col tile)
    """
    j = pl.program_id(1)

    # Build the zero-padded row once per batch element (x_ref is resident across j;
    # the L axis is "arbitrary", so j == 0 runs first for each b on its core).
    @pl.when(j == 0)
    def _fill():
        if pad > 0:
            pad_ref[...] = jnp.zeros_like(pad_ref)
        pad_ref[pl.ds(pad, L_src), :] = x_ref[0].astype(pad_ref.dtype)

    base = j * (TL * stride)
    if (TL * stride) % 8 == 0:
        base = pl.multiple_of(base, 8)

    # Pack K taps into the im2col scratch: lhs[t, k*C_in + c] = x_pad[base + t*stride + k, c]
    for k in range(K):                        # K is small & static -> unrolled
        if stride == 1:
            rows = pad_ref[pl.ds(base + k, TL), :]
        else:
            # TODO(synk): fold stride>1 into a glue-side reshape to avoid strided sublane reads.
            rows = pad_ref[pl.ds(base + k, TL, stride=stride), :]
        lhs_ref[:, k * C_in:(k + 1) * C_in] = rows.astype(lhs_ref.dtype)

    # One MXU contraction of depth K*C_in, f32 accumulation; bias + cast epilogue in f32.
    acc = jnp.dot(lhs_ref[...], w_ref[...], preferred_element_type=jnp.float32)
    o_ref[0] = (acc + b_ref[...]).astype(o_ref.dtype)


def _pick_l_tile(L_out):
    # Largest L-tile (multiple of 8, capped for v7x's smaller VMEM) that divides L_out;
    # otherwise fall back to a single full-length tile (full-dim blocks are always legal).
    for cand in (512, 256, 128, 64, 32, 16, 8):
        if L_out % cand == 0:
            return cand
    return L_out


def cnn_encoder_forward(x, statics, weight, bias, *, stride=1, padding=1,
                        padding_mode="zeros", compute_dtype=jnp.bfloat16):
    """x: (B, L, C_in). `statics` is unused (matches the PyTorch forward)."""
    del statics
    B, L, C_in = x.shape
    C_out, C_in_w, K = weight.shape
    assert C_in_w == C_in

    # --- glue -----------------------------------------------------------------
    if padding > 0 and padding_mode != "zeros":
        mode = {"circular": "wrap", "replicate": "edge", "reflect": "reflect"}[padding_mode]
        x_in = jnp.pad(x, ((0, 0), (padding, padding), (0, 0)), mode=mode)
        pad_k = 0                      # already padded in glue
    elif padding_mode in ("zeros", "circular", "replicate", "reflect"):
        x_in = x
        pad_k = padding                # zero padding fused into the kernel
    else:
        raise ValueError(padding_mode)

    L_src = x_in.shape[1]
    L_pad = L_src + 2 * pad_k
    L_out = (L_pad - K) // stride + 1

    TL = _pick_l_tile(L_out)
    NJ = L_out // TL
    # Max padded row used: (L_out-1)*stride + K - 1 <= L_pad - 1  -> always in-bounds.

    # weight (C_out, C_in, K) -> (K, C_in, C_out) -> (K*C_in, C_out): taps in the contraction dim.
    w_flat = jnp.transpose(weight, (2, 1, 0)).reshape(K * C_in, C_out).astype(compute_dtype)
    b_2d = bias.reshape(1, C_out).astype(jnp.float32)

    kernel = functools.partial(_conv1d_kernel, K=K, C_in=C_in, stride=stride,
                               TL=TL, pad=pad_k, L_src=L_src)

    out = pl.pallas_call(
        kernel,
        out_shape=jax.ShapeDtypeStruct((B, L_out, C_out), x.dtype),
        grid_spec=pltpu.PrefetchScalarGridSpec(
            num_scalar_prefetch=0,
            grid=(B, NJ),
            in_specs=[
                # Full raw sequence of batch b; index_map ignores j so the block
                # stays resident across the inner L axis (one DMA per batch element).
                pl.BlockSpec((1, L_src, C_in), lambda b, j: (b, 0, 0)),
                pl.BlockSpec((K * C_in, C_out), lambda b, j: (0, 0)),
                pl.BlockSpec((1, C_out), lambda b, j: (0, 0)),
            ],
            out_specs=pl.BlockSpec((1, TL, C_out), lambda b, j: (b, j, 0)),
            scratch_shapes=[
                pltpu.VMEM((L_pad, C_in), jnp.float32),       # zero-padded row (built in-kernel)
                pltpu.VMEM((TL, K * C_in), compute_dtype),    # im2col tile
            ],
        ),
        compiler_params=pltpu.CompilerParams(
            # L axis must stay ordered ("arbitrary") so the pl.when(j==0) scratch
            # fill precedes every tile of its batch row; batch axis feeds megacore.
            dimension_semantics=("parallel", "arbitrary"),
            vmem_limit_bytes=32 * 1024 * 1024,
        ),
    )(x_in, w_flat, b_2d)
    return out


def _reference(x, weight, bias, stride, padding, padding_mode, compute_dtype):
    # Pure-JAX reference mirroring PyTorch Conv1d on NCL layout.  Operands are rounded
    # through the kernel's compute dtype so both sides see identical values; both
    # accumulate in f32, so any difference is summation-order-level.
    xc = x.astype(compute_dtype).astype(jnp.float32)
    wc = weight.astype(compute_dtype).astype(jnp.float32)
    x_ncl = jnp.transpose(xc, (0, 2, 1))
    if padding_mode == "zeros":
        x_in = x_ncl
        pad_cfg = [(padding, padding)]
    else:
        mode = {"circular": "wrap", "replicate": "edge", "reflect": "reflect"}[padding_mode]
        x_in = jnp.pad(x_ncl, ((0, 0), (0, 0), (padding, padding)), mode=mode)
        pad_cfg = [(0, 0)]
    y = lax.conv_general_dilated(
        x_in, wc, window_strides=(stride,), padding=pad_cfg,
        dimension_numbers=("NCH", "OIH", "NCH"))
    y = y + bias.astype(jnp.float32)[None, :, None]
    return jnp.transpose(y, (0, 2, 1))


if __name__ == "__main__":
    # Small shapes consistent with the module's forward.
    B, L, C_in, C_out = 2, 16, 4, 8
    K, stride, padding, padding_mode = 3, 1, 1, "zeros"

    key = jax.random.PRNGKey(0)
    kx, kw, kb, ks = jax.random.split(key, 4)

    x = jax.random.normal(kx, (B, L, C_in), dtype=jnp.float32)
    statics = jax.random.normal(ks, (B, 4), dtype=jnp.float32)  # unused by forward

    # Deterministic Conv1d parameter init (PyTorch-style uniform bounds).
    fan_in = C_in * K
    bound = 1.0 / jnp.sqrt(jnp.float32(fan_in))
    weight = jax.random.uniform(kw, (C_out, C_in, K), jnp.float32, -bound, bound)
    bias = jax.random.uniform(kb, (C_out,), jnp.float32, -bound, bound)

    out = cnn_encoder_forward(x, statics, weight, bias,
                              stride=stride, padding=padding,
                              padding_mode=padding_mode)
    out = jax.block_until_ready(out)

    ref = _reference(x, weight, bias, stride, padding, padding_mode, jnp.bfloat16)
    assert out.shape == ref.shape == (B, L, C_out)
    err = float(jnp.max(jnp.abs(out.astype(jnp.float32) - ref)))
    assert err < 1e-3, f"max abs err {err}"

    print("KERNEL_OK")
</pallas_src>

<mosaic_0001>
module attributes {stable_mosaic.version = 11 : i64} {
  func.func @_conv1d_kernel(%arg0: i32, %arg1: i32, %arg2: memref<1x16x4xf32, #tpu.memory_space<vmem>>, %arg3: memref<12x8xbf16, #tpu.memory_space<vmem>>, %arg4: memref<1x8xf32, #tpu.memory_space<vmem>>, %arg5: memref<1x16x8xf32, #tpu.memory_space<vmem>>, %arg6: memref<18x4xf32, #tpu.memory_space<vmem>>, %arg7: memref<16x12xbf16, #tpu.memory_space<vmem>>) attributes {dimension_semantics = [#tpu.dimension_semantics<parallel>, #tpu.dimension_semantics<arbitrary>], iteration_bounds = array<i64: 2, 1>, scalar_prefetch = 0 : i64, scratch_operands = 2 : i64, tpu.core_type = #tpu.core_type<tc>, window_params = [{transform_indices = @transform_0, window_bounds = array<i64: 1, 16, 4>}, {pipeline_mode = #tpu.pipeline_mode<synchronous>, transform_indices = @transform_1, window_bounds = array<i64: 12, 8>}, {pipeline_mode = #tpu.pipeline_mode<synchronous>, transform_indices = @transform_2, window_bounds = array<i64: 1, 8>}, {transform_indices = @transform_3, window_bounds = array<i64: 1, 16, 8>}]} {
    %c0_i32 = arith.constant 0 : i32
    %0 = arith.cmpi eq, %arg1, %c0_i32 : i32
    %1 = arith.extui %0 : i1 to i32
    %c0_i32_0 = arith.constant 0 : i32
    %2 = arith.cmpi ne, %1, %c0_i32_0 : i32
    scf.if %2 {
      %cst_17 = arith.constant 0.000000e+00 : f32
      %29 = vector.broadcast %cst_17 : f32 to vector<18x4xf32>
      %c0_18 = arith.constant 0 : index
      %c0_19 = arith.constant 0 : index
      %30 = vector.load %arg6[%c0_18, %c0_19] : memref<18x4xf32, #tpu.memory_space<vmem>>, vector<18x4xf32>
      tpu.vector_store %arg6[%c0_18, %c0_19], %29 {strides = array<i32>} : memref<18x4xf32, #tpu.memory_space<vmem>>, vector<18x4xf32>,
      %c0_20 = arith.constant 0 : index
      %c0_21 = arith.constant 0 : index
      %c0_22 = arith.constant 0 : index
      %31 = vector.load %arg2[%c0_20, %c0_21, %c0_22] : memref<1x16x4xf32, #tpu.memory_space<vmem>>, vector<1x16x4xf32>
      %32 = vector.shape_cast %31 : vector<1x16x4xf32> to vector<16x4xf32>
      %c1 = arith.constant 1 : index
      %c0_23 = arith.constant 0 : index
      %33 = vector.load %arg6[%c1, %c0_23] : memref<18x4xf32, #tpu.memory_space<vmem>>, vector<16x4xf32>
      tpu.vector_store %arg6[%c1, %c0_23], %32 {strides = array<i32>} : memref<18x4xf32, #tpu.memory_space<vmem>>, vector<16x4xf32>,
    } else {
    }
    %c16_i32 = arith.constant 16 : i32
    %3 = arith.muli %arg1, %c16_i32 : i32
    %4 = tpu.assume_multiple %3, 8 : i32
    %c0_i32_1 = arith.constant 0 : i32
    %5 = arith.addi %4, %c0_i32_1 : i32
    %6 = arith.index_cast %5 : i32 to index
    %c0 = arith.constant 0 : index
    %7 = vector.load %arg6[%6, %c0] : memref<18x4xf32, #tpu.memory_space<vmem>>, vector<16x4xf32>
    %8 = arith.truncf %7 : vector<16x4xf32> to vector<16x4xbf16>
    %c0_2 = arith.constant 0 : index
    %c0_3 = arith.constant 0 : index
    %9 = vector.load %arg7[%c0_2, %c0_3] : memref<16x12xbf16, #tpu.memory_space<vmem>>, vector<16x4xbf16>
    tpu.vector_store %arg7[%c0_2, %c0_3], %8 {strides = array<i32>} : memref<16x12xbf16, #tpu.memory_space<vmem>>, vector<16x4xbf16>,
    %c1_i32 = arith.constant 1 : i32
    %10 = arith.addi %4, %c1_i32 : i32
    %11 = arith.index_cast %10 : i32 to index
    %c0_4 = arith.constant 0 : index
    %12 = vector.load %arg6[%11, %c0_4] : memref<18x4xf32, #tpu.memory_space<vmem>>, vector<16x4xf32>
    %13 = arith.truncf %12 : vector<16x4xf32> to vector<16x4xbf16>
    %c0_5 = arith.constant 0 : index
    %c4 = arith.constant 4 : index
    %14 = vector.load %arg7[%c0_5, %c4] : memref<16x12xbf16, #tpu.memory_space<vmem>>, vector<16x4xbf16>
    tpu.vector_store %arg7[%c0_5, %c4], %13 {strides = array<i32>} : memref<16x12xbf16, #tpu.memory_space<vmem>>, vector<16x4xbf16>,
    %c2_i32 = arith.constant 2 : i32
    %15 = arith.addi %4, %c2_i32 : i32
    %16 = arith.index_cast %15 : i32 to index
    %c0_6 = arith.constant 0 : index
    %17 = vector.load %arg6[%16, %c0_6] : memref<18x4xf32, #tpu.memory_space<vmem>>, vector<16x4xf32>
    %18 = arith.truncf %17 : vector<16x4xf32> to vector<16x4xbf16>
    %c0_7 = arith.constant 0 : index
    %c8 = arith.constant 8 : index
    %19 = vector.load %arg7[%c0_7, %c8] : memref<16x12xbf16, #tpu.memory_space<vmem>>, vector<16x4xbf16>
    tpu.vector_store %arg7[%c0_7, %c8], %18 {strides = array<i32>} : memref<16x12xbf16, #tpu.memory_space<vmem>>, vector<16x4xbf16>,
    %c0_8 = arith.constant 0 : index
    %c0_9 = arith.constant 0 : index
    %20 = vector.load %arg7[%c0_8, %c0_9] : memref<16x12xbf16, #tpu.memory_space<vmem>>, vector<16x12xbf16>
    %c0_10 = arith.constant 0 : index
    %c0_11 = arith.constant 0 : index
    %21 = vector.load %arg3[%c0_10, %c0_11] : memref<12x8xbf16, #tpu.memory_space<vmem>>, vector<12x8xbf16>
    %cst = arith.constant dense<0.000000e+00> : vector<16x8xf32>
    %22 = tpu.matmul %20, %21, %cst {dimension_numbers = #tpu.dot_dimension_numbers<[1], [0], [0], [1], [0, 0, 1, 1], [], []>} : vector<16x12xbf16>, vector<12x8xbf16>, vector<16x8xf32> -> vector<16x8xf32>
    %c0_12 = arith.constant 0 : index
    %c0_13 = arith.constant 0 : index
    %23 = vector.load %arg4[%c0_12, %c0_13] : memref<1x8xf32, #tpu.memory_space<vmem>>, vector<1x8xf32>
    %24 = vector.broadcast %23 : vector<1x8xf32> to vector<16x8xf32>
    %25 = arith.addf %22, %24 : vector<16x8xf32>
    %c0_14 = arith.constant 0 : index
    %c0_15 = arith.constant 0 : index
    %c0_16 = arith.constant 0 : index
    %26 = vector.load %arg5[%c0_14, %c0_15, %c0_16] : memref<1x16x8xf32, #tpu.memory_space<vmem>>, vector<1x16x8xf32>
    %27 = vector.shape_cast %26 : vector<1x16x8xf32> to vector<16x8xf32>
    %28 = vector.shape_cast %25 : vector<16x8xf32> to vector<1x16x8xf32>
    tpu.vector_store %arg5[%c0_14, %c0_15, %c0_16], %28 {strides = array<i32>} : memref<1x16x8xf32, #tpu.memory_space<vmem>>, vector<1x16x8xf32>,
    return
  }
  func.func @transform_0(%arg0: i32, %arg1: i32) -> (i32, i32, i32) {
    %c0_i32 = arith.constant 0 : i32
    %c0_i32_0 = arith.constant 0 : i32
    %c0_i32_1 = arith.constant 0 : i32
    return %arg0, %c0_i32, %c0_i32_0 : i32, i32, i32
  }
  func.func @transform_1(%arg0: i32, %arg1: i32) -> (i32, i32) {
    %c0_i32 = arith.constant 0 : i32
    %c0_i32_0 = arith.constant 0 : i32
    %c0_i32_1 = arith.constant 0 : i32
    return %c0_i32, %c0_i32_0 : i32, i32
  }
  func.func @transform_2(%arg0: i32, %arg1: i32) -> (i32, i32) {
    %c0_i32 = arith.constant 0 : i32
    %c0_i32_0 = arith.constant 0 : i32
    %c0_i32_1 = arith.constant 0 : i32
    return %c0_i32, %c0_i32_0 : i32, i32
  }
  func.func @transform_3(%arg0: i32, %arg1: i32) -> (i32, i32, i32) {
    %c0_i32 = arith.constant 0 : i32
    %c0_i32_0 = arith.constant 0 : i32
    return %arg0, %arg1, %c0_i32 : i32, i32, i32
  }
}

</mosaic_0001>

<llo_original>
// kernel: tpu_custom_call.1
$region0: #{tpu_custom_call.1}
  #allocation0 [shape = 'u32[]', space=smem, size = 0x4, offset = 0x4, fixed_abs, tag = 'smem constant byte address 0x4 - core index']
  #allocation1 [shape = 'u32[72,128]{1,0:T(1,128)}', space=vmem, size = 0x9000, scoped, tag = 'internal scratch']
  #allocation2 [shape = 'f32[18,4]{1,0:T(8,128)}', space=vmem, size = 0x3000, scoped, tag = 'scratch operand']
  #allocation3 [shape = 'bf16[16,12]{1,0:T(8,128)(2,1)}', space=vmem, size = 0x1000, scoped, tag = 'scratch operand']
  %s0 = inlined_call_operand.vmem [shape: f32[2,16,4], index: 0, kind: input, shape index: {}]
  %s1 = inlined_call_operand.vmem [shape: bf16[12,8], index: 1, kind: input, shape index: {}]
  %s2 = inlined_call_operand.vmem [shape: f32[1,8], index: 2, kind: input, shape index: {}]
  %s3 = inlined_call_operand.vmem [shape: f32[2,16,8], index: 3, kind: output, shape index: {}]
  %s4 = sld [smem:[#allocation0]]
  $region49: #{tpu_custom_call.1} parent=0
    _
  %s6 = ssub.s32 1, %s4
  %s7 = scalar_select 0, %s6, %s4
  loop: start=0, step=1, limit=4
  $region2: #{tpu_custom_call.1} parent=0 // loop_pre_header
    _
  $region3: #{tpu_custom_call.1} parent=0 // loop_header
    %s9 = sphi 0, %s13
    %p10 = scmp.ge.s32.totalorder %s9, 4
    %s16 = sphi 0, %s28
    %s17 = sphi 0, %s24
    %s18 = sphi 0, %s16
    %s19 = sphi 0, %s17
    %s20 = sphi 0, %s18
    %s21 = sphi 0, %s19
    %s31 = sphi 0, %s33
    %s34 = sphi 0, %s31
    %s35 = sphi 0, %s34
    %s51 = sphi 0, %s35
    %s55 = sphi 0, %s55
    %s57 = sphi 0, %s55
    %s58 = sphi 0, %s57
    %s72 = sphi 0, %s58
    %s76 = sphi 0, %s76
    %s78 = sphi 0, %s76
    %s79 = sphi 0, %s78
    %s93 = sphi 0, %s79
    %s101 = sphi 0, %s103
    %s104 = sphi 0, %s101
    %s105 = sphi 0, %s104
    %s121 = sphi 0, %s105
  $region4: #{tpu_custom_call.1} parent=0 // loop_header_branch
    %12 = sbr.rel (%p10) target = $region8
  $region5: #{tpu_custom_call.1} parent=0 // loop_body
    %s14 = ssub.s32 %s9, 1
    %s15 = ssub.s32 %s9, 2
    %s22 = sadd.s32 1, %s17
    %p23 = scmp.ge.s32.totalorder %s22, 1
    %s24 = scalar_select %p23, 0, %s22
    %s25 = sadd.s32 1, %s16
    %s26 = scalar_select %p23, %s25, %s16
    %p27 = scmp.ge.s32.totalorder %s26, 2
    %s28 = scalar_select %p27, 0, %s26
    %s29 = ssub.s32 %s16, %s28
    %p30 = scmp.eq.s32.totalorder %s29, 0
    %s32 = sadd.s32 %s31, 1
    %s33 = scalar_select %p30, %s31, %s32
    %p36 = pneg %p30
    %p37 = scmp.eq.s32.totalorder %s9, 1
    %p38 = por %p36, %p37
    %p39 = scmp.ne.s32.totalorder %s31, %s34
    %p40 = scmp.eq.s32.totalorder %s9, 0
    %p41 = por %p39, %p40
    %p42 = scmp.ne.s32.totalorder %s31, %s34
    %p43 = scmp.eq.s32.totalorder %s14, 1
    %p44 = por %p42, %p43
    %p45 = scmp.ne.s32.totalorder %s34, %s35
    %p46 = scmp.eq.s32.totalorder %s14, 0
    %p47 = por %p45, %p46
    %p48 = scmp.ne.s32.totalorder %s34, %s35
    %p49 = scmp.eq.s32.totalorder %s15, 1
    %p50 = por %p48, %p49
    %p52 = scmp.ne.s32.totalorder %s35, %s51
    %p53 = scmp.eq.s32.totalorder %s15, 0
    %p54 = por %p52, %p53
    %s56 = sadd.s32 %s55, 1
    %p59 = scmp.eq.s32.totalorder %s9, 1
    %p60 = scmp.ne.s32.totalorder %s55, %s57
    %p61 = scmp.eq.s32.totalorder %s9, 0
    %p62 = por %p60, %p61
    %p63 = scmp.ne.s32.totalorder %s55, %s57
    %p64 = scmp.eq.s32.totalorder %s14, 1
    %p65 = por %p63, %p64
    %p66 = scmp.ne.s32.totalorder %s57, %s58
    %p67 = scmp.eq.s32.totalorder %s14, 0
    %p68 = por %p66, %p67
    %p69 = scmp.ne.s32.totalorder %s57, %s58
    %p70 = scmp.eq.s32.totalorder %s15, 1
    %p71 = por %p69, %p70
    %p73 = scmp.ne.s32.totalorder %s58, %s72
    %p74 = scmp.eq.s32.totalorder %s15, 0
    %p75 = por %p73, %p74
    %s77 = sadd.s32 %s76, 1
    %p80 = scmp.eq.s32.totalorder %s9, 1
    %p81 = scmp.ne.s32.totalorder %s76, %s78
    %p82 = scmp.eq.s32.totalorder %s9, 0
    %p83 = por %p81, %p82
    %p84 = scmp.ne.s32.totalorder %s76, %s78
    %p85 = scmp.eq.s32.totalorder %s14, 1
    %p86 = por %p84, %p85
    %p87 = scmp.ne.s32.totalorder %s78, %s79
    %p88 = scmp.eq.s32.totalorder %s14, 0
    %p89 = por %p87, %p88
    %p90 = scmp.ne.s32.totalorder %s78, %s79
    %p91 = scmp.eq.s32.totalorder %s15, 1
    %p92 = por %p90, %p91
    %p94 = scmp.ne.s32.totalorder %s79, %s93
    %p95 = scmp.eq.s32.totalorder %s15, 0
    %p96 = por %p94, %p95
    %s97 = ssub.s32 %s16, %s28
    %s98 = ssub.s32 %s17, %s24
    %s99 = sor.u32 %s97, %s98
    %p100 = scmp.eq.s32.totalorder %s99, 0
    %s102 = sadd.s32 %s101, 1
    %s103 = scalar_select %p100, %s101, %s102
    %p106 = pneg %p100
    %p107 = scmp.eq.s32.totalorder %s9, 1
    %p108 = por %p106, %p107
    %p109 = scmp.ne.s32.totalorder %s101, %s104
    %p110 = scmp.eq.s32.totalorder %s9, 0
    %p111 = por %p109, %p110
    %p112 = scmp.ne.s32.totalorder %s101, %s104
    %p113 = scmp.eq.s32.totalorder %s14, 1
    %p114 = por %p112, %p113
    %p115 = scmp.ne.s32.totalorder %s104, %s105
    %p116 = scmp.eq.s32.totalorder %s14, 0
    %p117 = por %p115, %p116
    %p118 = scmp.ne.s32.totalorder %s104, %s105
    %p119 = scmp.eq.s32.totalorder %s15, 1
    %p120 = por %p118, %p119
    %p122 = scmp.ne.s32.totalorder %s105, %s121
    %p123 = scmp.eq.s32.totalorder %s15, 0
    %p124 = por %p122, %p123
    %p125 = scmp.le.s32.totalorder 1, %s9
    %p126 = scmp.lt.s32.totalorder %s9, 3
    %p127 = pnand %p125, %p126
    %p128 = pneg %p127
    // Predicated region
    $region9: #{tpu_custom_call.1} parent=5 // pred_check
      _
    $region10: #{tpu_custom_call.1} parent=5 // pred_check_branch
      %130 = sbr.rel (%p127) target = $region12
    $region11: #{tpu_custom_call.1} parent=5 // pred_region
      %s131 = ssub.s32 %s9, 1
      // Predicated region
      $region13: #{tpu_custom_call.1} parent=11 // pred_check
        %p132 = pneg %p68
      $region14: #{tpu_custom_call.1} parent=11 // pred_check_branch
        %134 = sbr.rel (%p132) target = $region16
      $region15: #{tpu_custom_call.1} parent=11 // pred_region
        _
      $region16: #{tpu_custom_call.1} parent=11 // pred_fallthru
        _
      // Predicated region
      $region17: #{tpu_custom_call.1} parent=11 // pred_check
        %p135 = pneg %p89
      $region18: #{tpu_custom_call.1} parent=11 // pred_check_branch
        %137 = sbr.rel (%p135) target = $region20
      $region19: #{tpu_custom_call.1} parent=11 // pred_region
        _
      $region20: #{tpu_custom_call.1} parent=11 // pred_fallthru
        _
    $region12: #{tpu_custom_call.1} parent=5 // pred_fallthru
      _
    %p138 = scmp.lt.s32.totalorder %s9, 2
    // Predicated region
    $region21: #{tpu_custom_call.1} parent=5 // pred_check
      %p139 = pneg %p138
    $region22: #{tpu_custom_call.1} parent=5 // pred_check_branch
      %141 = sbr.rel (%p139) target = $region24
    $region23: #{tpu_custom_call.1} parent=5 // pred_region
      // Predicated region
      $region25: #{tpu_custom_call.1} parent=23 // pred_check
        %p142 = pneg %p41
      $region26: #{tpu_custom_call.1} parent=23 // pred_check_branch
        %144 = sbr.rel (%p142) target = $region28
      $region27: #{tpu_custom_call.1} parent=23 // pred_region
        %p145 = scmp.lt.s32.totalorder %s16, 1
        %s146 = scalar_select %p145, %s16, 1
        %s147 = smul.addr %s146, 2
        %s148 = smul.addr %s147, 8
        %s149 = scalar_lea.vmem %s0, %s148
      $region28: #{tpu_custom_call.1} parent=23 // pred_fallthru
        _
    $region24: #{tpu_custom_call.1} parent=5 // pred_fallthru
      _
    %p150 = scmp.le.s32.totalorder 1, %s9
    %p151 = scmp.lt.s32.totalorder %s9, 3
    %p152 = pnand %p150, %p151
    %p153 = pneg %p152
    // Predicated region
    $region29: #{tpu_custom_call.1} parent=5 // pred_check
      _
    $region30: #{tpu_custom_call.1} parent=5 // pred_check_branch
      %155 = sbr.rel (%p152) target = $region32
    $region31: #{tpu_custom_call.1} parent=5 // pred_region
      %s156 = ssub.s32 %s9, 1
      %p157 = scmp.lt.s32.totalorder %s18, 1
      %s158 = scalar_select %p157, %s18, 1
      %s159 = smul.addr %s158, 2
      %s160 = smul.addr %s159, 8
      %s161 = scalar_lea.vmem %s0, %s160
      %p162 = pneg %p47
      %p163 = pneg %p44
      %p164 = pneg %p68
      %p165 = pneg %p65
      %p166 = pneg %p89
      %p167 = pneg %p86
      %p168 = pneg %p117
      %p169 = pneg %p114
      %s170 = smul.u32 2, %s19
      %p171 = scmp.lt.s32.totalorder %s18, 1
      %s172 = scalar_select %p171, %s18, 1
      %p173 = scmp.lt.s32.totalorder %s170, 1
      %s174 = scalar_select %p173, %s170, 1
      %s175 = smul.addr %s172, 2
      %s176 = sadd.s32 %s174, %s175
      %s177 = smul.addr %s176, 8
      %s178 = scalar_lea.vmem %s3, %s177
      %p179 = scmp.lt.s32.totalorder %s18, 1
      %s180 = scalar_select %p179, %s18, 1
      %s181 = smul.addr %s180, 2
      %s182 = smul.addr %s181, 8
      %s183 = scalar_lea.vmem %s0, %s182
      %s184 = smul.u32 2, %s19
      %p185 = scmp.lt.s32.totalorder %s18, 1
      %s186 = scalar_select %p185, %s18, 1
      %p187 = scmp.lt.s32.totalorder %s184, 1
      %s188 = scalar_select %p187, %s184, 1
      %s189 = smul.addr %s186, 2
      %s190 = sadd.s32 %s188, %s189
      %s191 = smul.addr %s190, 8
      %s192 = scalar_lea.vmem %s3, %s191
      %s193 = smul.u32 2, %s19
      %p195 = scmp.eq.s32.totalorder %s19, 0
      // Predicated region
      $region33: #{tpu_custom_call.1} parent=31 // pred_check
        %p196 = pneg %p195
      $region34: #{tpu_custom_call.1} parent=31 // pred_check_branch
        %198 = sbr.rel (%p196) target = $region36
      $region35: #{tpu_custom_call.1} parent=31 // pred_region
        %vm199 = vcmask 31744
        %200 = vst.msk [vmem:[#allocation2] sm:$0xff] %vm199, 0.0
        %201 = vst.msk [vmem:[#allocation2 + $0x8] sm:$0xff] %vm199, 0.0
        %vm202 = vcmask 25600
        %203 = vst.msk [vmem:[#allocation2 + $0x10] sm:$0x3] %vm202, 0.0
        %v204 = vld [vmem:[%s183] sm:$0xff]
        %v205 = vld [vmem:[%s183 + $0x8] sm:$0xff]
        %206 = vst.msk [vmem:[#allocation2 + $0x1] sm:$0xff] %vm199, %v204
        %207 = vst.msk [vmem:[#allocation2 + $0x9] sm:$0xff] %vm199, %v205
      $region36: #{tpu_custom_call.1} parent=31 // pred_fallthru
        _
      %s208 = smul.u32 %s19, 16
      %s209 = scalar_lea.vmem [#allocation2], %s208
      %v210 = vld [vmem:[%s209] sm:$0xff]
      %v211 = vld [vmem:[%s209 + $0x8] sm:$0xff]
      %v212 = vpack.c.bf16 %v210, %v210
      %v213 = vpack.c.bf16 %v211, %v211
      %vm214 = vcmask 27648
      %215 = vst.msk [vmem:[#allocation3] sm:$0xf] %vm214, %v212
      %216 = vst.msk [vmem:[#allocation3 + $0x4] sm:$0xf] %vm214, %v213
      %s217 = sadd.s32 %s208, 1
      %s218 = scalar_lea.vmem [#allocation2], %s217
      %v219 = vld [vmem:[%s218] sm:$0xff]
      %v220 = vld [vmem:[%s218 + $0x8] sm:$0xff]
      %v221 = vpack.c.bf16 %v219, %v219
      %v222 = vpack.c.bf16 %v220, %v220
      %225 = vrot.lane.b32.xlu0 %v221, 4
      %v226 = vpop.permute.xlu0 %225
      %227 = vrot.lane.b32.xlu0 %v222, 4
      %v228 = vpop.permute.xlu0 %227
      %vm231 = vcmask 60448
      %232 = vst.msk [vmem:[#allocation3] sm:$0xf] %vm231, %v226
      %233 = vst.msk [vmem:[#allocation3 + $0x4] sm:$0xf] %vm231, %v228
      %s234 = sadd.s32 %s208, 2
      %s235 = scalar_lea.vmem [#allocation2], %s234
      %v236 = vld [vmem:[%s235] sm:$0xff]
      %v237 = vld [vmem:[%s235 + $0x8] sm:$0xff]
      %v238 = vpack.c.bf16 %v236, %v236
      %v239 = vpack.c.bf16 %v237, %v237
      %242 = vrot.lane.b32.xlu0 %v238, 8
      %v243 = vpop.permute.xlu0 %242
      %244 = vrot.lane.b32.xlu0 %v239, 8
      %v245 = vpop.permute.xlu0 %244
      %vm248 = vcmask 93248
      %249 = vst.msk [vmem:[#allocation3] sm:$0xf] %vm248, %v243
      %250 = vst.msk [vmem:[#allocation3 + $0x4] sm:$0xf] %vm248, %v245
      %v251 = vld [vmem:[#allocation3] sm:$0xf]
      %v252 = vld [vmem:[#allocation3 + $0x4] sm:$0xf]
      %v253 = vld [vmem:[%s1] sm:$0xf]
      %v254 = vld [vmem:[%s1 + $0x4] sm:$0x3]
      %v255 = vld [vmem:[%s2] sm:$0x1]
      %v257 = vperm.slane %v255, 0
      %v261 = vunpack.c.l.b16 %v251
      %v262 = vunpack.c.l.b16 %v252
      %v263 = vpack.c.b16 %v262, %v261
      %v266 = vunpack.c.l.b16 %v253
      %v267 = vunpack.c.l.b16 %v254
      %v268 = vpack.c.b16 %v267, %v266
      %vm269 = vcmask 97280
      %v271 = vsel %vm269, %v263, 0
      %vm273 = vcmask 1045504
      %v275 = vsel %vm273, %v268, 0
      %277 = vmatpush.bf16.msra.mxu0 0
      %278 = vmatpush.bf16.msra.mxu0 0
      %279 = vmatpush.bf16.msra.mxu0 0
      %280 = vmatpush.bf16.msra.mxu0 0
      %281 = vmatpush.bf16.msra.mxu0 0
      %282 = vmatpush.bf16.msra.mxu0 0
      %283 = vmatpush.bf16.msra.mxu0 0
      %284 = vmatpush.bf16.msra.mxu0 %v275
      %285 = vmatmul.bf16.gmra.mxu0 %v271
      %v286 = vpop.f32.mrf.mxu0
      %v287 = vadd.f32 %v257, %v286
      %v288 = vpop.f32.mrf.mxu0
      %v289 = vadd.f32 %v257, %v288
      %290 = vdwg.mxu0
      %vm291 = vcmask 64512
      %292 = vst.msk [vmem:[%s192] sm:$0xff] %vm291, %v287
      %293 = vst.msk [vmem:[%s192 + $0x8] sm:$0xff] %vm291, %v289
      %s294 = smul.u32 2, %s19
      %p295 = scmp.lt.s32.totalorder %s18, 1
      %s296 = scalar_select %p295, %s18, 1
      %p297 = scmp.lt.s32.totalorder %s294, 1
      %s298 = scalar_select %p297, %s294, 1
      %s299 = smul.addr %s296, 2
      %s300 = sadd.s32 %s298, %s299
      %s301 = smul.addr %s300, 8
      %s302 = scalar_lea.vmem %s3, %s301
      // Predicated region
      $region37: #{tpu_custom_call.1} parent=31 // pred_check
        %p303 = pneg %p114
      $region38: #{tpu_custom_call.1} parent=31 // pred_check_branch
        %305 = sbr.rel (%p303) target = $region40
      $region39: #{tpu_custom_call.1} parent=31 // pred_region
        %s306 = smul.u32 2, %s19
      $region40: #{tpu_custom_call.1} parent=31 // pred_fallthru
        _
    $region32: #{tpu_custom_call.1} parent=5 // pred_fallthru
      _
    %p307 = scmp.le.s32.totalorder 2, %s9
    // Predicated region
    $region41: #{tpu_custom_call.1} parent=5 // pred_check
      %p308 = pneg %p307
    $region42: #{tpu_custom_call.1} parent=5 // pred_check_branch
      %310 = sbr.rel (%p308) target = $region44
    $region43: #{tpu_custom_call.1} parent=5 // pred_region
      %s311 = ssub.s32 %s9, 2
      // Predicated region
      $region45: #{tpu_custom_call.1} parent=43 // pred_check
        %p312 = pneg %p120
      $region46: #{tpu_custom_call.1} parent=43 // pred_check_branch
        %314 = sbr.rel (%p312) target = $region48
      $region47: #{tpu_custom_call.1} parent=43 // pred_region
        %s315 = smul.u32 2, %s21
        %p316 = scmp.lt.s32.totalorder %s20, 1
        %s317 = scalar_select %p316, %s20, 1
        %p318 = scmp.lt.s32.totalorder %s315, 1
        %s319 = scalar_select %p318, %s315, 1
        %s320 = smul.addr %s317, 2
        %s321 = sadd.s32 %s319, %s320
        %s322 = smul.addr %s321, 8
        %s323 = scalar_lea.vmem %s3, %s322
      $region48: #{tpu_custom_call.1} parent=43 // pred_fallthru
        _
    $region44: #{tpu_custom_call.1} parent=5 // pred_fallthru
      _
  $region6: #{tpu_custom_call.1} parent=0 // loop_footer
    %s13 = sadd.s32 1, %s9
  $region7: #{tpu_custom_call.1} parent=0 // loop_footer_branch
    %8 = sbr.rel target = $region3
  $region8: #{tpu_custom_call.1} parent=0 // loop_exit
    _

</llo_original>
